<compile_context>
chip_gen: v6e
topology: v6e:2x2x1
jax: 0.10.0
libtpu: 0.0.40
codegen_flags: <defaults>
</compile_context>

<pallas_src>
import jax
import jax.numpy as jnp
from jax.experimental import pallas as pl
from jax.experimental.pallas import tpu as pltpu


# ---------------------------------------------------------------------------
# Pallas kernel: 5 matmuls (bf16 operands -> f32 acc) + a masked group-sum that
# writes the per-sample scores lane-densely.  All shifts/ReLU/VPU math in f32.
# ---------------------------------------------------------------------------
def graphrec_kernel(
    x_ref,                      # (TR, 128) bf16   P packed samples per row
    w1_ref, t1_ref,             # (128,128) bf16, (1,128) f32  blkdiag(w_ur1*bn1, w_vr1*bn2) x P
    w2_ref, t2_ref,             # (128,128) bf16, (1,128) f32  blkdiag(w_ur2, w_vr2) x P
    w3_ref, t3_ref,             # (128,P*D) bf16, (1,P*D) f32  blkdiag(w_uv1*bn3) x P
    w4_ref, t4_ref,             # (P*D,P*16) bf16,(1,P*16) f32 blkdiag(w_uv2*bn4) x P
    g_ref,                      # (P*16,128) bf16  lane-scatter copy of w_uv3
    m_ref,                      # (GR, 128) f32    row-select mask, GR = 128 // P
    b5_ref,                     # (1, 1) f32       w_uv3 bias
    out_ref,                    # (TQ, 128) f32    score of sample 128*q + l at [q, l]
):
    def mm(x, w_ref):
        # MXU matmul: bf16 operands, f32 accumulate.
        return jnp.dot(x.astype(w_ref.dtype), w_ref[...],
                       preferred_element_type=jnp.float32)

    x = x_ref[...]                                            # already bf16
    # user+item first linear + folded BN + ReLU   (one block-diag matmul)
    h = jnp.maximum(mm(x, w1_ref) + t1_ref[...], 0.0)
    # user+item second linear (block-diag): rows are already [x_u | x_v] per sample
    h = mm(h, w2_ref) + t2_ref[...]
    # w_uv1 + folded bn3 + ReLU
    h = jnp.maximum(mm(h, w3_ref) + t3_ref[...], 0.0)
    # w_uv2 + folded bn4 + ReLU
    h = jnp.maximum(mm(h, w4_ref) + t4_ref[...], 0.0)         # (TR, P*16) f32
    # w_uv3 as a lane-scatter matmul: s[r, l] = pre-bias score of the (l % P)-th
    # sample packed in row r (each row's P scores replicated across 128 lanes).
    s = mm(h, g_ref)                                          # (TR, 128) f32

    # Lane-dense relayout: out[q, l] = s[GR*q + l//P, l]  (exactly one mask hit
    # per output element), realized as a masked sum over each group of GR rows.
    m = m_ref[...]                                            # (GR, 128) f32
    gr = m_ref.shape[0]
    tq = out_ref.shape[0]
    for q in range(tq):                                       # static unroll
        blk = s[gr * q:gr * (q + 1), :]                       # (GR, 128) static slice
        out_ref[q:q + 1, :] = (jnp.sum(blk * m, axis=0, keepdims=True)
                               + b5_ref[...])


# ---------------------------------------------------------------------------
# Wrapper
# ---------------------------------------------------------------------------
def _round_up(x, m):
    return ((x + m - 1) // m) * m


def graphrec_forward(embeds_u, embeds_v, folded, *, tb=2048):
    """embeds_u / embeds_v: (B, D) f32.  folded: dict from fold_params()."""
    B, D = embeds_u.shape
    assert embeds_v.shape == (B, D)
    assert 2 * D <= 128 and 128 % (2 * D) == 0, "packing assumes 2*embed_dim divides 128"
    P = 128 // (2 * D)                          # samples packed per 128-lane row

    # --- batch tiling ------------------------------------------------------
    # TB stays a multiple of 1024 (so the lane-dense (TB//128, 128) out block is
    # 8-row aligned) unless the whole padded batch fits in one tile.  TB=2048
    # uses ~4-5 MiB of VMEM per step: safe for v5e (16 MiB scoped default),
    # v6e (32 MiB) and v7x (64 MiB physical).  Batches larger than TB get >= 2
    # "parallel" grid steps, keeping both v7x TensorCores busy.
    b128 = _round_up(max(B, 1), 128)
    tb = max(1024, (tb // 1024) * 1024)
    TB = b128 if b128 <= tb else tb             # samples per grid step
    B_pad = _round_up(b128, TB)
    TR = TB // P                                # packed rows per grid step
    TQ = TB // 128                              # lane-dense output rows per grid step
    grid = (B_pad // TB,)

    # --- input packing: one fused wrapper op (concat + bf16 cast + pad + reshape)
    x = jnp.concatenate([embeds_u, embeds_v], axis=1).astype(jnp.bfloat16)  # (B, 2D)
    if B_pad != B:
        x = jnp.pad(x, ((0, B_pad - B), (0, 0)))
    x = x.reshape(B_pad // P, 128)              # row r holds samples P*r .. P*r+P-1

    def resident(arr):
        # whole-array block, same block index every grid step -> stays in VMEM
        return pl.BlockSpec(arr.shape, lambda i: (0,) * arr.ndim)

    w1, t1 = folded["w1"], folded["t1"]
    w2, t2 = folded["w2"], folded["t2"]
    w3, t3 = folded["w3"], folded["t3"]
    w4, t4 = folded["w4"], folded["t4"]
    g, m, b5 = folded["g"], folded["m"], folded["b5"]

    out = pl.pallas_call(
        graphrec_kernel,
        out_shape=jax.ShapeDtypeStruct((B_pad // 128, 128), jnp.float32),
        grid_spec=pltpu.PrefetchScalarGridSpec(
            num_scalar_prefetch=0,
            grid=grid,
            in_specs=[
                pl.BlockSpec((TR, 128), lambda i: (i, 0)),    # packed activations
                resident(w1), resident(t1),
                resident(w2), resident(t2),
                resident(w3), resident(t3),
                resident(w4), resident(t4),
                resident(g), resident(m), resident(b5),
            ],
            out_specs=pl.BlockSpec((TQ, 128), lambda i: (i, 0)),
        ),
        compiler_params=pltpu.CompilerParams(
            dimension_semantics=("parallel",),
        ),
    )(x, w1, t1, w2, t2, w3, t3, w4, t4, g, m, b5)

    # out[p, l] == score of sample 128*p + l; flatten and drop the batch padding.
    return out.reshape(-1)[:B]


# ---------------------------------------------------------------------------
# Parameters: PyTorch-style raw params + wrapper-side BN/bias/packing folding.
# ---------------------------------------------------------------------------
def _linear_raw(key, in_dim, out_dim):
    # nn.Linear default init: U(-1/sqrt(in), 1/sqrt(in)) for W (out,in) and b (out,)
    kw, kb = jax.random.split(key)
    bound = 1.0 / jnp.sqrt(jnp.float32(in_dim))
    w = jax.random.uniform(kw, (out_dim, in_dim), jnp.float32, -bound, bound)
    b = jax.random.uniform(kb, (out_dim,), jnp.float32, -bound, bound)
    return w, b


def _bn_raw(dim):
    # default nn.BatchNorm1d state: gamma=1, beta=0, running_mean=0, running_var=1
    return dict(gamma=jnp.ones((dim,), jnp.float32),
                beta=jnp.zeros((dim,), jnp.float32),
                mean=jnp.zeros((dim,), jnp.float32),
                var=jnp.ones((dim,), jnp.float32))


def make_raw_params(key, embed_dim):
    keys = jax.random.split(key, 7)
    p = {}
    p["w_ur1"], p["b_ur1"] = _linear_raw(keys[0], embed_dim, embed_dim)
    p["w_ur2"], p["b_ur2"] = _linear_raw(keys[1], embed_dim, embed_dim)
    p["w_vr1"], p["b_vr1"] = _linear_raw(keys[2], embed_dim, embed_dim)
    p["w_vr2"], p["b_vr2"] = _linear_raw(keys[3], embed_dim, embed_dim)
    p["w_uv1"], p["b_uv1"] = _linear_raw(keys[4], 2 * embed_dim, embed_dim)
    p["w_uv2"], p["b_uv2"] = _linear_raw(keys[5], embed_dim, 16)
    p["w_uv3"], p["b_uv3"] = _linear_raw(keys[6], 16, 1)
    p["bn1"], p["bn2"], p["bn3"], p["bn4"] = (
        _bn_raw(embed_dim), _bn_raw(embed_dim), _bn_raw(embed_dim), _bn_raw(16))
    return p


def _block_diag(*blocks):
    rows = sum(b.shape[0] for b in blocks)
    cols = sum(b.shape[1] for b in blocks)
    out = jnp.zeros((rows, cols), blocks[0].dtype)
    r = c = 0
    for b in blocks:
        out = out.at[r:r + b.shape[0], c:c + b.shape[1]].set(b)
        r += b.shape[0]
        c += b.shape[1]
    return out


def fold_params(raw, embed_dim, eps=1e-5, mxu_dtype=jnp.bfloat16):
    """Fold eval-mode BN into weights, merge the user/item branches and the
    P-samples-per-row lane packing into block-diagonal weights, build the
    w_uv3 lane-scatter matrix and the row-select mask, pre-transpose to
    (in, out), and cast all MXU weights to bf16."""
    D = embed_dim
    assert 2 * D <= 128 and 128 % (2 * D) == 0
    P = 128 // (2 * D)          # samples per 128-lane row
    GR = 2 * D                  # packed rows holding 128 consecutive samples

    def bn_scale_shift(bn):
        s = bn["gamma"] / jnp.sqrt(bn["var"] + eps)
        t = bn["beta"] - bn["mean"] * s
        return s, t

    def fold(w, b, bn):
        # y = (x @ W^T + b) * s + t  ->  x @ (W^T * s) + (b * s + t)
        s, t = bn_scale_shift(bn)
        return w.T * s[None, :], (b * s + t)[None, :]

    w_ur1f, t_ur1 = fold(raw["w_ur1"], raw["b_ur1"], raw["bn1"])
    w_vr1f, t_vr1 = fold(raw["w_vr1"], raw["b_vr1"], raw["bn2"])
    w_uv1f, t_uv1 = fold(raw["w_uv1"], raw["b_uv1"], raw["bn3"])
    w_uv2f, t_uv2 = fold(raw["w_uv2"], raw["b_uv2"], raw["bn4"])

    # layer 1: P copies of blkdiag(BN-folded user / item first linears)
    w1 = _block_diag(*([w_ur1f, w_vr1f] * P))                           # (128, 128)
    t1 = jnp.tile(jnp.concatenate([t_ur1, t_vr1], axis=1), (1, P))      # (1, 128)
    # layer 2: P copies of blkdiag(second linears) -> rows become [x_u | x_v] x P
    w2 = _block_diag(*([raw["w_ur2"].T, raw["w_vr2"].T] * P))           # (128, 128)
    t2 = jnp.tile(jnp.concatenate([raw["b_ur2"][None, :],
                                   raw["b_vr2"][None, :]], axis=1), (1, P))
    # layers 3/4: P copies of the BN-folded joint linears
    w3 = _block_diag(*([w_uv1f] * P))                                   # (128, P*D)
    t3 = jnp.tile(t_uv1, (1, P))
    w4 = _block_diag(*([w_uv2f] * P))                                   # (P*D, P*16)
    t4 = jnp.tile(t_uv2, (1, P))

    # lane-scatter copy of w_uv3: g[c, l] = w5[c % 16] iff c // 16 == l % P,
    # so (h4 @ g)[r, l] = pre-bias score of the (l % P)-th sample packed in row r.
    w5 = raw["w_uv3"].reshape(-1)                                       # (16,)
    c = jnp.arange(P * 16)
    l = jnp.arange(128)
    g = jnp.where((c[:, None] // 16) == (l[None, :] % P),
                  w5[c % 16][:, None], 0.0)                             # (P*16, 128)
    # row-select mask: m[j, l] = 1 iff j == l // P  (one hit per output lane)
    j = jnp.arange(GR)
    m = (j[:, None] == (l[None, :] // P)).astype(jnp.float32)           # (GR, 128)

    return {
        "w1": w1.astype(mxu_dtype), "t1": t1,
        "w2": w2.astype(mxu_dtype), "t2": t2,
        "w3": w3.astype(mxu_dtype), "t3": t3,
        "w4": w4.astype(mxu_dtype), "t4": t4,
        "g": g.astype(mxu_dtype),
        "m": m,
        "b5": raw["b_uv3"].reshape(1, 1).astype(jnp.float32),
    }


# ---------------------------------------------------------------------------
# Plain-JAX f32 reference (unfolded, matches PyTorch eval-mode forward).
# ---------------------------------------------------------------------------
def reference_forward(embeds_u, embeds_v, raw, eps=1e-5):
    def lin(x, w, b):
        return x @ w.T + b[None, :]

    def bn(x, p):
        return (x - p["mean"]) / jnp.sqrt(p["var"] + eps) * p["gamma"] + p["beta"]

    x_u = jnp.maximum(bn(lin(embeds_u, raw["w_ur1"], raw["b_ur1"]), raw["bn1"]), 0.0)
    x_u = lin(x_u, raw["w_ur2"], raw["b_ur2"])
    x_v = jnp.maximum(bn(lin(embeds_v, raw["w_vr1"], raw["b_vr1"]), raw["bn2"]), 0.0)
    x_v = lin(x_v, raw["w_vr2"], raw["b_vr2"])
    x_uv = jnp.concatenate([x_u, x_v], axis=1)
    x = jnp.maximum(bn(lin(x_uv, raw["w_uv1"], raw["b_uv1"]), raw["bn3"]), 0.0)
    x = jnp.maximum(bn(lin(x, raw["w_uv2"], raw["b_uv2"]), raw["bn4"]), 0.0)
    return lin(x, raw["w_uv3"], raw["b_uv3"])[:, 0]


if __name__ == "__main__":
    key = jax.random.PRNGKey(0)
    k_emb_u, k_emb_v, k_nodes_u, k_nodes_v, k_params = jax.random.split(key, 5)

    embed_dim = 32   # enc_u.embed_dim
    num_users = 64   # small synthetic embedding tables (stand-ins for enc_u / enc_v_history)
    num_items = 64
    batch = 8

    # TODO(synk): enc_u / enc_v_history are external graph aggregators in the
    # original code; modeled here as dense embedding tables (glue, not Pallas).
    user_table = jax.random.normal(k_emb_u, (num_users, embed_dim), jnp.float32)
    item_table = jax.random.normal(k_emb_v, (num_items, embed_dim), jnp.float32)

    nodes_u = jax.random.randint(k_nodes_u, (batch,), 0, num_users)
    nodes_v = jax.random.randint(k_nodes_v, (batch,), 0, num_items)
    embeds_u = user_table[nodes_u]
    embeds_v = item_table[nodes_v]

    raw = make_raw_params(k_params, embed_dim)
    folded = fold_params(raw, embed_dim)

    scores = graphrec_forward(embeds_u, embeds_v, folded)
    jax.block_until_ready(scores)

    ref = reference_forward(embeds_u, embeds_v, raw)
    assert scores.shape == (batch,)
    # relative-error check (bf16 MXU operands vs pure-f32 reference)
    err = float(jnp.max(jnp.abs(scores - ref)) /
                jnp.maximum(jnp.max(jnp.abs(ref)), 1e-3))
    assert err < 5e-2, (err, scores, ref)

    print("KERNEL_OK")
</pallas_src>

<mosaic_0001>
module attributes {stable_mosaic.version = 11 : i64} {
  func.func @graphrec_kernel(%arg0: i32, %arg1: memref<64x128xbf16, #tpu.memory_space<vmem>>, %arg2: memref<128x128xbf16, #tpu.memory_space<vmem>>, %arg3: memref<1x128xf32, #tpu.memory_space<vmem>>, %arg4: memref<128x128xbf16, #tpu.memory_space<vmem>>, %arg5: memref<1x128xf32, #tpu.memory_space<vmem>>, %arg6: memref<128x64xbf16, #tpu.memory_space<vmem>>, %arg7: memref<1x64xf32, #tpu.memory_space<vmem>>, %arg8: memref<64x32xbf16, #tpu.memory_space<vmem>>, %arg9: memref<1x32xf32, #tpu.memory_space<vmem>>, %arg10: memref<32x128xbf16, #tpu.memory_space<vmem>>, %arg11: memref<64x128xf32, #tpu.memory_space<vmem>>, %arg12: memref<1x1xf32, #tpu.memory_space<vmem>>, %arg13: memref<1x128xf32, #tpu.memory_space<vmem>>) attributes {dimension_semantics = [#tpu.dimension_semantics<parallel>], iteration_bounds = array<i64: 1>, scalar_prefetch = 0 : i64, scratch_operands = 0 : i64, tpu.core_type = #tpu.core_type<tc>, window_params = [{transform_indices = @transform_0, window_bounds = array<i64: 64, 128>}, {pipeline_mode = #tpu.pipeline_mode<synchronous>, transform_indices = @transform_1, window_bounds = array<i64: 128, 128>}, {pipeline_mode = #tpu.pipeline_mode<synchronous>, transform_indices = @transform_2, window_bounds = array<i64: 1, 128>}, {pipeline_mode = #tpu.pipeline_mode<synchronous>, transform_indices = @transform_3, window_bounds = array<i64: 128, 128>}, {pipeline_mode = #tpu.pipeline_mode<synchronous>, transform_indices = @transform_4, window_bounds = array<i64: 1, 128>}, {pipeline_mode = #tpu.pipeline_mode<synchronous>, transform_indices = @transform_5, window_bounds = array<i64: 128, 64>}, {pipeline_mode = #tpu.pipeline_mode<synchronous>, transform_indices = @transform_6, window_bounds = array<i64: 1, 64>}, {pipeline_mode = #tpu.pipeline_mode<synchronous>, transform_indices = @transform_7, window_bounds = array<i64: 64, 32>}, {pipeline_mode = #tpu.pipeline_mode<synchronous>, transform_indices = @transform_8, window_bounds = array<i64: 1, 32>}, {pipeline_mode = #tpu.pipeline_mode<synchronous>, transform_indices = @transform_9, window_bounds = array<i64: 32, 128>}, {pipeline_mode = #tpu.pipeline_mode<synchronous>, transform_indices = @transform_10, window_bounds = array<i64: 64, 128>}, {pipeline_mode = #tpu.pipeline_mode<synchronous>, transform_indices = @transform_11, window_bounds = array<i64: 1, 1>}, {transform_indices = @transform_12, window_bounds = array<i64: 1, 128>}]} {
    %c0 = arith.constant 0 : index
    %c0_0 = arith.constant 0 : index
    %0 = vector.load %arg1[%c0, %c0_0] : memref<64x128xbf16, #tpu.memory_space<vmem>>, vector<64x128xbf16>
    %c0_1 = arith.constant 0 : index
    %c0_2 = arith.constant 0 : index
    %1 = vector.load %arg2[%c0_1, %c0_2] : memref<128x128xbf16, #tpu.memory_space<vmem>>, vector<128x128xbf16>
    %cst = arith.constant dense<0.000000e+00> : vector<64x128xf32>
    %2 = tpu.matmul %0, %1, %cst {dimension_numbers = #tpu.dot_dimension_numbers<[1], [0], [0], [1], [0, 0, 1, 1], [], []>} : vector<64x128xbf16>, vector<128x128xbf16>, vector<64x128xf32> -> vector<64x128xf32>
    %c0_3 = arith.constant 0 : index
    %c0_4 = arith.constant 0 : index
    %3 = vector.load %arg3[%c0_3, %c0_4] : memref<1x128xf32, #tpu.memory_space<vmem>>, vector<1x128xf32>
    %4 = vector.broadcast %3 : vector<1x128xf32> to vector<64x128xf32>
    %5 = arith.addf %2, %4 : vector<64x128xf32>
    %cst_5 = arith.constant 0.000000e+00 : f32
    %6 = vector.broadcast %cst_5 : f32 to vector<64x128xf32>
    %7 = arith.maximumf %5, %6 : vector<64x128xf32>
    %8 = arith.truncf %7 : vector<64x128xf32> to vector<64x128xbf16>
    %c0_6 = arith.constant 0 : index
    %c0_7 = arith.constant 0 : index
    %9 = vector.load %arg4[%c0_6, %c0_7] : memref<128x128xbf16, #tpu.memory_space<vmem>>, vector<128x128xbf16>
    %cst_8 = arith.constant dense<0.000000e+00> : vector<64x128xf32>
    %10 = tpu.matmul %8, %9, %cst_8 {dimension_numbers = #tpu.dot_dimension_numbers<[1], [0], [0], [1], [0, 0, 1, 1], [], []>} : vector<64x128xbf16>, vector<128x128xbf16>, vector<64x128xf32> -> vector<64x128xf32>
    %c0_9 = arith.constant 0 : index
    %c0_10 = arith.constant 0 : index
    %11 = vector.load %arg5[%c0_9, %c0_10] : memref<1x128xf32, #tpu.memory_space<vmem>>, vector<1x128xf32>
    %12 = vector.broadcast %11 : vector<1x128xf32> to vector<64x128xf32>
    %13 = arith.addf %10, %12 : vector<64x128xf32>
    %14 = arith.truncf %13 : vector<64x128xf32> to vector<64x128xbf16>
    %c0_11 = arith.constant 0 : index
    %c0_12 = arith.constant 0 : index
    %15 = vector.load %arg6[%c0_11, %c0_12] : memref<128x64xbf16, #tpu.memory_space<vmem>>, vector<128x64xbf16>
    %cst_13 = arith.constant dense<0.000000e+00> : vector<64x64xf32>
    %16 = tpu.matmul %14, %15, %cst_13 {dimension_numbers = #tpu.dot_dimension_numbers<[1], [0], [0], [1], [0, 0, 1, 1], [], []>} : vector<64x128xbf16>, vector<128x64xbf16>, vector<64x64xf32> -> vector<64x64xf32>
    %c0_14 = arith.constant 0 : index
    %c0_15 = arith.constant 0 : index
    %17 = vector.load %arg7[%c0_14, %c0_15] : memref<1x64xf32, #tpu.memory_space<vmem>>, vector<1x64xf32>
    %18 = vector.broadcast %17 : vector<1x64xf32> to vector<64x64xf32>
    %19 = arith.addf %16, %18 : vector<64x64xf32>
    %cst_16 = arith.constant 0.000000e+00 : f32
    %20 = vector.broadcast %cst_16 : f32 to vector<64x64xf32>
    %21 = arith.maximumf %19, %20 : vector<64x64xf32>
    %22 = arith.truncf %21 : vector<64x64xf32> to vector<64x64xbf16>
    %c0_17 = arith.constant 0 : index
    %c0_18 = arith.constant 0 : index
    %23 = vector.load %arg8[%c0_17, %c0_18] : memref<64x32xbf16, #tpu.memory_space<vmem>>, vector<64x32xbf16>
    %cst_19 = arith.constant dense<0.000000e+00> : vector<64x32xf32>
    %24 = tpu.matmul %22, %23, %cst_19 {dimension_numbers = #tpu.dot_dimension_numbers<[1], [0], [0], [1], [0, 0, 1, 1], [], []>} : vector<64x64xbf16>, vector<64x32xbf16>, vector<64x32xf32> -> vector<64x32xf32>
    %c0_20 = arith.constant 0 : index
    %c0_21 = arith.constant 0 : index
    %25 = vector.load %arg9[%c0_20, %c0_21] : memref<1x32xf32, #tpu.memory_space<vmem>>, vector<1x32xf32>
    %26 = vector.broadcast %25 : vector<1x32xf32> to vector<64x32xf32>
    %27 = arith.addf %24, %26 : vector<64x32xf32>
    %cst_22 = arith.constant 0.000000e+00 : f32
    %28 = vector.broadcast %cst_22 : f32 to vector<64x32xf32>
    %29 = arith.maximumf %27, %28 : vector<64x32xf32>
    %30 = arith.truncf %29 : vector<64x32xf32> to vector<64x32xbf16>
    %c0_23 = arith.constant 0 : index
    %c0_24 = arith.constant 0 : index
    %31 = vector.load %arg10[%c0_23, %c0_24] : memref<32x128xbf16, #tpu.memory_space<vmem>>, vector<32x128xbf16>
    %cst_25 = arith.constant dense<0.000000e+00> : vector<64x128xf32>
    %32 = tpu.matmul %30, %31, %cst_25 {dimension_numbers = #tpu.dot_dimension_numbers<[1], [0], [0], [1], [0, 0, 1, 1], [], []>} : vector<64x32xbf16>, vector<32x128xbf16>, vector<64x128xf32> -> vector<64x128xf32>
    %c0_26 = arith.constant 0 : index
    %c0_27 = arith.constant 0 : index
    %33 = vector.load %arg11[%c0_26, %c0_27] : memref<64x128xf32, #tpu.memory_space<vmem>>, vector<64x128xf32>
    %34 = arith.mulf %32, %33 : vector<64x128xf32>
    %cst_28 = arith.constant dense<0.000000e+00> : vector<128xf32>
    %35 = vector.multi_reduction <add>, %34, %cst_28 [0] : vector<64x128xf32> to vector<128xf32>
    %36 = vector.shape_cast %35 : vector<128xf32> to vector<1x128xf32>
    %c0_29 = arith.constant 0 : index
    %c0_30 = arith.constant 0 : index
    %37 = vector.load %arg12[%c0_29, %c0_30] : memref<1x1xf32, #tpu.memory_space<vmem>>, vector<1x1xf32>
    %38 = vector.broadcast %37 : vector<1x1xf32> to vector<1x128xf32>
    %39 = arith.addf %36, %38 : vector<1x128xf32>
    %c0_31 = arith.constant 0 : index
    %c0_32 = arith.constant 0 : index
    %40 = vector.load %arg13[%c0_31, %c0_32] : memref<1x128xf32, #tpu.memory_space<vmem>>, vector<1x128xf32>
    tpu.vector_store %arg13[%c0_31, %c0_32], %39 {strides = array<i32>} : memref<1x128xf32, #tpu.memory_space<vmem>>, vector<1x128xf32>,
    return
  }
  func.func @transform_0(%arg0: i32) -> (i32, i32) {
    %c0_i32 = arith.constant 0 : i32
    %c0_i32_0 = arith.constant 0 : i32
    return %arg0, %c0_i32 : i32, i32
  }
  func.func @transform_1(%arg0: i32) -> (i32, i32) {
    %c0_i32 = arith.constant 0 : i32
    %c0_i32_0 = arith.constant 0 : i32
    %c0_i32_1 = arith.constant 0 : i32
    return %c0_i32, %c0_i32_0 : i32, i32
  }
  func.func @transform_2(%arg0: i32) -> (i32, i32) {
    %c0_i32 = arith.constant 0 : i32
    %c0_i32_0 = arith.constant 0 : i32
    %c0_i32_1 = arith.constant 0 : i32
    return %c0_i32, %c0_i32_0 : i32, i32
  }
  func.func @transform_3(%arg0: i32) -> (i32, i32) {
    %c0_i32 = arith.constant 0 : i32
    %c0_i32_0 = arith.constant 0 : i32
    %c0_i32_1 = arith.constant 0 : i32
    return %c0_i32, %c0_i32_0 : i32, i32
  }
  func.func @transform_4(%arg0: i32) -> (i32, i32) {
    %c0_i32 = arith.constant 0 : i32
    %c0_i32_0 = arith.constant 0 : i32
    %c0_i32_1 = arith.constant 0 : i32
    return %c0_i32, %c0_i32_0 : i32, i32
  }
  func.func @transform_5(%arg0: i32) -> (i32, i32) {
    %c0_i32 = arith.constant 0 : i32
    %c0_i32_0 = arith.constant 0 : i32
    %c0_i32_1 = arith.constant 0 : i32
    return %c0_i32, %c0_i32_0 : i32, i32
  }
  func.func @transform_6(%arg0: i32) -> (i32, i32) {
    %c0_i32 = arith.constant 0 : i32
    %c0_i32_0 = arith.constant 0 : i32
    %c0_i32_1 = arith.constant 0 : i32
    return %c0_i32, %c0_i32_0 : i32, i32
  }
  func.func @transform_7(%arg0: i32) -> (i32, i32) {
    %c0_i32 = arith.constant 0 : i32
    %c0_i32_0 = arith.constant 0 : i32
    %c0_i32_1 = arith.constant 0 : i32
    return %c0_i32, %c0_i32_0 : i32, i32
  }
  func.func @transform_8(%arg0: i32) -> (i32, i32) {
    %c0_i32 = arith.constant 0 : i32
    %c0_i32_0 = arith.constant 0 : i32
    %c0_i32_1 = arith.constant 0 : i32
    return %c0_i32, %c0_i32_0 : i32, i32
  }
  func.func @transform_9(%arg0: i32) -> (i32, i32) {
    %c0_i32 = arith.constant 0 : i32
    %c0_i32_0 = arith.constant 0 : i32
    %c0_i32_1 = arith.constant 0 : i32
    return %c0_i32, %c0_i32_0 : i32, i32
  }
  func.func @transform_10(%arg0: i32) -> (i32, i32) {
    %c0_i32 = arith.constant 0 : i32
    %c0_i32_0 = arith.constant 0 : i32
    %c0_i32_1 = arith.constant 0 : i32
    return %c0_i32, %c0_i32_0 : i32, i32
  }
  func.func @transform_11(%arg0: i32) -> (i32, i32) {
    %c0_i32 = arith.constant 0 : i32
    %c0_i32_0 = arith.constant 0 : i32
    %c0_i32_1 = arith.constant 0 : i32
    return %c0_i32, %c0_i32_0 : i32, i32
  }
  func.func @transform_12(%arg0: i32) -> (i32, i32) {
    %c0_i32 = arith.constant 0 : i32
    %c0_i32_0 = arith.constant 0 : i32
    return %arg0, %c0_i32 : i32, i32
  }
}

</mosaic_0001>

<llo_original>
// kernel: tpu_custom_call.1
$region0: #{tpu_custom_call.1}
  #allocation0 [shape = 'u32[]', space=smem, size = 0x4, offset = 0x4, fixed_abs, tag = 'smem constant byte address 0x4 - core index']
  #allocation1 [shape = 'u32[144,128]{1,0:T(1,128)}', space=vmem, size = 0x12000, scoped, tag = 'internal scratch']
  #allocation2 [shape = 'f32[1,1]{1,0:T(1,128)S(1)}', space=vmem, size = 0x200, scoped, tag = 'scoped memory for tpu_custom_call.1']
  %s0 = inlined_call_operand.hbm [shape: bf16[64,128], index: 0, kind: input, shape index: {}]
  %s1 = inlined_call_operand.vmem [shape: bf16[128,128], index: 1, kind: input, shape index: {}]
  %s2 = inlined_call_operand.vmem [shape: f32[1,128], index: 2, kind: input, shape index: {}]
  %s3 = inlined_call_operand.vmem [shape: bf16[128,128], index: 3, kind: input, shape index: {}]
  %s4 = inlined_call_operand.vmem [shape: f32[1,128], index: 4, kind: input, shape index: {}]
  %s5 = inlined_call_operand.vmem [shape: bf16[128,64], index: 5, kind: input, shape index: {}]
  %s6 = inlined_call_operand.vmem [shape: f32[1,64], index: 6, kind: input, shape index: {}]
  %s7 = inlined_call_operand.vmem [shape: bf16[64,32], index: 7, kind: input, shape index: {}]
  %s8 = inlined_call_operand.vmem [shape: f32[1,32], index: 8, kind: input, shape index: {}]
  %s9 = inlined_call_operand.vmem [shape: bf16[32,128], index: 9, kind: input, shape index: {}]
  %s10 = inlined_call_operand.hbm [shape: f32[64,128], index: 10, kind: input, shape index: {}]
  %s11 = inlined_call_operand.<no memory space> [shape: f32[1,1], index: 11, kind: input, shape index: {}]
  %s12 = inlined_call_operand.hbm [shape: f32[1,128], index: 12, kind: output, shape index: {}]
  %s13 = sld [smem:[#allocation0]]
  $region66: #{tpu_custom_call.1} parent=0
    _
  %s15 = ssub.s32 1, %s13
  %s16 = scalar_select 0, %s15, %s13
  %v17 = vstv %s11
  %18 = vst [vmem:[#allocation2] sm:$0x1] %v17
  $region1: #{tpu_custom_call.1} parent=0
    #allocation3 [shape = 'u8[16384]{0}', space=vmem, size = 0x4000, scoped, tag = 'input window, operand 0, single buffered']
    #allocation4 [shape = 's32[1]{0}', space=sflag, size = 0x4, scoped, tag = 'scoped memory for tpu_custom_call.1']
    #allocation5 [shape = 's32[1]{0}', space=sflag, size = 0x4, scoped, tag = 'scoped memory for tpu_custom_call.1']
    #allocation6 [shape = 'u8[32768]{0}', space=vmem, size = 0x8000, scoped, tag = 'input window, operand 10, single buffered']
    #allocation7 [shape = 's32[1]{0}', space=sflag, size = 0x4, scoped, tag = 'scoped memory for tpu_custom_call.1']
    #allocation8 [shape = 'u8[512]{0}', space=vmem, size = 0x400, scoped, tag = 'output window, operand 0, single buffered']
    %19 = vsyncpa [#allocation4], 0
    %20 = vsyncpa [#allocation7], 0
    %21 = vsyncpa [#allocation5], 0
    // Predicated region
    $region2: #{tpu_custom_call.1} parent=1 // pred_check
      _
    $region3: #{tpu_custom_call.1} parent=1 // pred_check_branch
      %23 = sbr.rel (0) target = $region5
    $region4: #{tpu_custom_call.1} parent=1 // pred_region
      %s25 = ssub.s32 512, 512
      %26 = vsyncadd [#allocation4], %s25
      %s27 = sshll.u32 [#allocation3], 4
      %s28 = int_to_ptr.vmem [resolvable:$true] %s27
      %33 = dma.hbm_to_vmem [thread:$0]  %s0, 512, %s28, [#allocation4], 64, 64, 4
    $region5: #{tpu_custom_call.1} parent=1 // pred_fallthru
      _
    // Predicated region
    $region6: #{tpu_custom_call.1} parent=1 // pred_check
      _
    $region7: #{tpu_custom_call.1} parent=1 // pred_check_branch
      %35 = sbr.rel (0) target = $region9
    $region8: #{tpu_custom_call.1} parent=1 // pred_region
      _
    $region9: #{tpu_custom_call.1} parent=1 // pred_fallthru
      _
    // Predicated region
    $region10: #{tpu_custom_call.1} parent=1 // pred_check
      _
    $region11: #{tpu_custom_call.1} parent=1 // pred_check_branch
      %37 = sbr.rel (0) target = $region13
    $region12: #{tpu_custom_call.1} parent=1 // pred_region
      _
    $region13: #{tpu_custom_call.1} parent=1 // pred_fallthru
      _
    // Predicated region
    $region14: #{tpu_custom_call.1} parent=1 // pred_check
      _
    $region15: #{tpu_custom_call.1} parent=1 // pred_check_branch
      %39 = sbr.rel (0) target = $region17
    $region16: #{tpu_custom_call.1} parent=1 // pred_region
      _
    $region17: #{tpu_custom_call.1} parent=1 // pred_fallthru
      _
    // Predicated region
    $region18: #{tpu_custom_call.1} parent=1 // pred_check
      _
    $region19: #{tpu_custom_call.1} parent=1 // pred_check_branch
      %41 = sbr.rel (0) target = $region21
    $region20: #{tpu_custom_call.1} parent=1 // pred_region
      _
    $region21: #{tpu_custom_call.1} parent=1 // pred_fallthru
      _
    // Predicated region
    $region22: #{tpu_custom_call.1} parent=1 // pred_check
      _
    $region23: #{tpu_custom_call.1} parent=1 // pred_check_branch
      %43 = sbr.rel (0) target = $region25
    $region24: #{tpu_custom_call.1} parent=1 // pred_region
      _
    $region25: #{tpu_custom_call.1} parent=1 // pred_fallthru
      _
    // Predicated region
    $region26: #{tpu_custom_call.1} parent=1 // pred_check
      _
    $region27: #{tpu_custom_call.1} parent=1 // pred_check_branch
      %45 = sbr.rel (0) target = $region29
    $region28: #{tpu_custom_call.1} parent=1 // pred_region
      _
    $region29: #{tpu_custom_call.1} parent=1 // pred_fallthru
      _
    // Predicated region
    $region30: #{tpu_custom_call.1} parent=1 // pred_check
      _
    $region31: #{tpu_custom_call.1} parent=1 // pred_check_branch
      %47 = sbr.rel (0) target = $region33
    $region32: #{tpu_custom_call.1} parent=1 // pred_region
      _
    $region33: #{tpu_custom_call.1} parent=1 // pred_fallthru
      _
    // Predicated region
    $region34: #{tpu_custom_call.1} parent=1 // pred_check
      _
    $region35: #{tpu_custom_call.1} parent=1 // pred_check_branch
      %49 = sbr.rel (0) target = $region37
    $region36: #{tpu_custom_call.1} parent=1 // pred_region
      _
    $region37: #{tpu_custom_call.1} parent=1 // pred_fallthru
      _
    // Predicated region
    $region38: #{tpu_custom_call.1} parent=1 // pred_check
      _
    $region39: #{tpu_custom_call.1} parent=1 // pred_check_branch
      %51 = sbr.rel (0) target = $region41
    $region40: #{tpu_custom_call.1} parent=1 // pred_region
      _
    $region41: #{tpu_custom_call.1} parent=1 // pred_fallthru
      _
    // Predicated region
    $region42: #{tpu_custom_call.1} parent=1 // pred_check
      _
    $region43: #{tpu_custom_call.1} parent=1 // pred_check_branch
      %53 = sbr.rel (0) target = $region45
    $region44: #{tpu_custom_call.1} parent=1 // pred_region
      %s55 = ssub.s32 1024, 1024
      %56 = vsyncadd [#allocation7], %s55
      %s57 = sshll.u32 [#allocation6], 4
      %s58 = int_to_ptr.vmem [resolvable:$true] %s57
      %63 = dma.hbm_to_vmem [thread:$0]  %s10, 1024, %s58, [#allocation7], 128, 128, 8
    $region45: #{tpu_custom_call.1} parent=1 // pred_fallthru
      _
    // Predicated region
    $region46: #{tpu_custom_call.1} parent=1 // pred_check
      _
    $region47: #{tpu_custom_call.1} parent=1 // pred_check_branch
      %65 = sbr.rel (0) target = $region49
    $region48: #{tpu_custom_call.1} parent=1 // pred_region
      _
    $region49: #{tpu_custom_call.1} parent=1 // pred_fallthru
      _
    // Predicated region
    $region50: #{tpu_custom_call.1} parent=1 // pred_check
      _
    $region51: #{tpu_custom_call.1} parent=1 // pred_check_branch
      %67 = sbr.rel (0) target = $region53
    $region52: #{tpu_custom_call.1} parent=1 // pred_region
      %68 = dma.done [#allocation4], 512
    $region53: #{tpu_custom_call.1} parent=1 // pred_fallthru
      _
    // Predicated region
    $region54: #{tpu_custom_call.1} parent=1 // pred_check
      _
    $region55: #{tpu_custom_call.1} parent=1 // pred_check_branch
      %70 = sbr.rel (0) target = $region57
    $region56: #{tpu_custom_call.1} parent=1 // pred_region
      %71 = dma.done [#allocation7], 1024
    $region57: #{tpu_custom_call.1} parent=1 // pred_fallthru
      _
    %v73 = vld [vmem:[#allocation3] sm:$0xf]
    %v74 = vld [vmem:[#allocation3 + $0x4] sm:$0xf]
    %v75 = vld [vmem:[#allocation3 + $0x8] sm:$0xf]
    %v76 = vld [vmem:[#allocation3 + $0xc] sm:$0xf]
    %v77 = vld [vmem:[#allocation3 + $0x10] sm:$0xf]
    %v78 = vld [vmem:[#allocation3 + $0x14] sm:$0xf]
    %v79 = vld [vmem:[#allocation3 + $0x18] sm:$0xf]
    %v80 = vld [vmem:[#allocation3 + $0x1c] sm:$0xf]
    %v81 = vld [vmem:[%s1] sm:$0xf]
    %v82 = vld [vmem:[%s1 + $0x4] sm:$0xf]
    %v83 = vld [vmem:[%s1 + $0x8] sm:$0xf]
    %v84 = vld [vmem:[%s1 + $0xc] sm:$0xf]
    %v85 = vld [vmem:[%s1 + $0x10] sm:$0xf]
    %v86 = vld [vmem:[%s1 + $0x14] sm:$0xf]
    %v87 = vld [vmem:[%s1 + $0x18] sm:$0xf]
    %v88 = vld [vmem:[%s1 + $0x1c] sm:$0xf]
    %v89 = vld [vmem:[%s1 + $0x20] sm:$0xf]
    %v90 = vld [vmem:[%s1 + $0x24] sm:$0xf]
    %v91 = vld [vmem:[%s1 + $0x28] sm:$0xf]
    %v92 = vld [vmem:[%s1 + $0x2c] sm:$0xf]
    %v93 = vld [vmem:[%s1 + $0x30] sm:$0xf]
    %v94 = vld [vmem:[%s1 + $0x34] sm:$0xf]
    %v95 = vld [vmem:[%s1 + $0x38] sm:$0xf]
    %v96 = vld [vmem:[%s1 + $0x3c] sm:$0xf]
    %v97 = vld [vmem:[%s2] sm:$0x1]
    %v99 = vlaneseq
    %v100 = vshrl.u32 %v99, 7
    %v101 = vsub.s32 0, %v100
    %v102 = vrot.slane %v97, %v101
    %v112 = vunpack.c.l.b16 %v73
    %v113 = vunpack.c.l.b16 %v74
    %v114 = vunpack.c.l.b16 %v75
    %v115 = vunpack.c.l.b16 %v76
    %v116 = vunpack.c.l.b16 %v77
    %v117 = vunpack.c.l.b16 %v78
    %v118 = vunpack.c.l.b16 %v79
    %v119 = vunpack.c.l.b16 %v80
    %v120 = vpack.c.b16 %v113, %v112
    %v121 = vpack.c.b16 %v115, %v114
    %v122 = vpack.c.b16 %v117, %v116
    %v123 = vpack.c.b16 %v119, %v118
    %v144 = vunpack.c.l.b16 %v81
    %v145 = vunpack.c.l.b16 %v82
    %v146 = vunpack.c.l.b16 %v83
    %v147 = vunpack.c.l.b16 %v84
    %v148 = vunpack.c.l.b16 %v85
    %v149 = vunpack.c.l.b16 %v86
    %v150 = vunpack.c.l.b16 %v87
    %v151 = vunpack.c.l.b16 %v88
    %v152 = vunpack.c.l.b16 %v89
    %v153 = vunpack.c.l.b16 %v90
    %v154 = vunpack.c.l.b16 %v91
    %v155 = vunpack.c.l.b16 %v92
    %v156 = vunpack.c.l.b16 %v93
    %v157 = vunpack.c.l.b16 %v94
    %v158 = vunpack.c.l.b16 %v95
    %v159 = vunpack.c.l.b16 %v96
    %v160 = vpack.c.b16 %v145, %v144
    %v161 = vpack.c.b16 %v147, %v146
    %v162 = vpack.c.b16 %v149, %v148
    %v163 = vpack.c.b16 %v151, %v150
    %v164 = vpack.c.b16 %v153, %v152
    %v165 = vpack.c.b16 %v155, %v154
    %v166 = vpack.c.b16 %v157, %v156
    %v167 = vpack.c.b16 %v159, %v158
    %176 = vmatprep.subr.bf16.mxu0 0
    %177 = vmatpush1.bf16.msra.mxu0 %v167
    %178 = vmatprep.subr.bf16.mxu0 0
    %179 = vmatpush1.bf16.msra.mxu0 %v166
    %180 = vmatprep.subr.bf16.mxu0 0
    %181 = vmatpush1.bf16.msra.mxu0 %v165
    %182 = vmatprep.subr.bf16.mxu0 0
    %183 = vmatpush1.bf16.msra.mxu0 %v164
    %184 = vmatprep.subr.bf16.mxu0 0
    %185 = vmatpush1.bf16.msra.mxu0 %v163
    %186 = vmatprep.subr.bf16.mxu0 0
    %187 = vmatpush1.bf16.msra.mxu0 %v162
    %188 = vmatprep.subr.bf16.mxu0 0
    %189 = vmatpush1.bf16.msra.mxu0 %v161
    %190 = vmatprep.subr.bf16.mxu0 0
    %191 = vmatpush1.bf16.msra.mxu0 %v160
    %192 = vmatprep.subr.bf16.mxu0 0
    %193 = vmatpush2.bf16.msra.mxu0 0
    %194 = vmatprep.subr.bf16.mxu0 0
    %195 = vmatpush2.bf16.msra.mxu0 0
    %196 = vmatprep.subr.bf16.mxu0 0
    %197 = vmatpush2.bf16.msra.mxu0 0
    %198 = vmatprep.subr.bf16.mxu0 0
    %199 = vmatpush2.bf16.msra.mxu0 0
    %200 = vmatprep.subr.bf16.mxu0 0
    %201 = vmatpush2.bf16.msra.mxu0 0
    %202 = vmatprep.subr.bf16.mxu0 0
    %203 = vmatpush2.bf16.msra.mxu0 0
    %204 = vmatprep.subr.bf16.mxu0 0
    %205 = vmatpush2.bf16.msra.mxu0 0
    %206 = vmatprep.subr.bf16.mxu0 0
    %207 = vmatpush2.bf16.msra.mxu0 0
    %208 = vmatprep.mubr.bf16.mxu0 0
    %209 = vmatmul.mubr.bf16.gmra.mxu0 %v120
    %v210 = vpop.f32.mrf.mxu0
    %v211 = vadd.f32 %v102, %v210
    %v212 = vpop.f32.mrf.mxu0
    %v213 = vpop.f32.mrf.mxu0
    %v214 = vadd.f32 %v102, %v213
    %v215 = vpop.f32.mrf.mxu0
    %216 = vmatprep.mubr.bf16.mxu0 0
    %217 = vmatmul.mubr.bf16.gmra.mxu0 %v121
    %v218 = vpop.f32.mrf.mxu0
    %v219 = vadd.f32 %v102, %v218
    %v220 = vpop.f32.mrf.mxu0
    %v221 = vpop.f32.mrf.mxu0
    %v222 = vadd.f32 %v102, %v221
    %v223 = vpop.f32.mrf.mxu0
    %224 = vmatprep.mubr.bf16.mxu0 0
    %225 = vmatmul.mubr.bf16.gmra.mxu0 %v122
    %v226 = vpop.f32.mrf.mxu0
    %v227 = vadd.f32 %v102, %v226
    %v228 = vpop.f32.mrf.mxu0
    %v229 = vpop.f32.mrf.mxu0
    %v230 = vadd.f32 %v102, %v229
    %v231 = vpop.f32.mrf.mxu0
    %232 = vmatprep.mubr.bf16.mxu0 0
    %233 = vmatmul.mubr.bf16.gmra.mxu0 %v123
    %v234 = vpop.f32.mrf.mxu0
    %v235 = vadd.f32 %v102, %v234
    %v236 = vpop.f32.mrf.mxu0
    %v237 = vpop.f32.mrf.mxu0
    %v238 = vadd.f32 %v102, %v237
    %v239 = vpop.f32.mrf.mxu0
    %240 = vdwg.mxu0
    %v241 = vmax.f32 %v211, 0.0
    %v242 = vmax.f32 %v214, 0.0
    %v243 = vmax.f32 %v219, 0.0
    %v244 = vmax.f32 %v222, 0.0
    %v245 = vmax.f32 %v227, 0.0
    %v246 = vmax.f32 %v230, 0.0
    %v247 = vmax.f32 %v235, 0.0
    %v248 = vmax.f32 %v238, 0.0
    %v249 = vpack.c.bf16 %v242, %v241
    %v250 = vpack.c.bf16 %v244, %v243
    %v251 = vpack.c.bf16 %v246, %v245
    %v252 = vpack.c.bf16 %v248, %v247
    %v253 = vld [vmem:[%s3] sm:$0xf]
    %v254 = vld [vmem:[%s3 + $0x4] sm:$0xf]
    %v255 = vld [vmem:[%s3 + $0x8] sm:$0xf]
    %v256 = vld [vmem:[%s3 + $0xc] sm:$0xf]
    %v257 = vld [vmem:[%s3 + $0x10] sm:$0xf]
    %v258 = vld [vmem:[%s3 + $0x14] sm:$0xf]
    %v259 = vld [vmem:[%s3 + $0x18] sm:$0xf]
    %v260 = vld [vmem:[%s3 + $0x1c] sm:$0xf]
    %v261 = vld [vmem:[%s3 + $0x20] sm:$0xf]
    %v262 = vld [vmem:[%s3 + $0x24] sm:$0xf]
    %v263 = vld [vmem:[%s3 + $0x28] sm:$0xf]
    %v264 = vld [vmem:[%s3 + $0x2c] sm:$0xf]
    %v265 = vld [vmem:[%s3 + $0x30] sm:$0xf]
    %v266 = vld [vmem:[%s3 + $0x34] sm:$0xf]
    %v267 = vld [vmem:[%s3 + $0x38] sm:$0xf]
    %v268 = vld [vmem:[%s3 + $0x3c] sm:$0xf]
    %v269 = vld [vmem:[%s4] sm:$0x1]
    %v271 = vlaneseq
    %v272 = vshrl.u32 %v271, 7
    %v273 = vsub.s32 0, %v272
    %v274 = vrot.slane %v269, %v273
    %v292 = vunpack.c.l.b16 %v253
    %v293 = vunpack.c.l.b16 %v254
    %v294 = vunpack.c.l.b16 %v255
    %v295 = vunpack.c.l.b16 %v256
    %v296 = vunpack.c.l.b16 %v257
    %v297 = vunpack.c.l.b16 %v258
    %v298 = vunpack.c.l.b16 %v259
    %v299 = vunpack.c.l.b16 %v260
    %v300 = vunpack.c.l.b16 %v261
    %v301 = vunpack.c.l.b16 %v262
    %v302 = vunpack.c.l.b16 %v263
    %v303 = vunpack.c.l.b16 %v264
    %v304 = vunpack.c.l.b16 %v265
    %v305 = vunpack.c.l.b16 %v266
    %v306 = vunpack.c.l.b16 %v267
    %v307 = vunpack.c.l.b16 %v268
    %v308 = vpack.c.b16 %v293, %v292
    %v309 = vpack.c.b16 %v295, %v294
    %v310 = vpack.c.b16 %v297, %v296
    %v311 = vpack.c.b16 %v299, %v298
    %v312 = vpack.c.b16 %v301, %v300
    %v313 = vpack.c.b16 %v303, %v302
    %v314 = vpack.c.b16 %v305, %v304
    %v315 = vpack.c.b16 %v307, %v306
    %324 = vmatprep.subr.bf16.mxu0 0
    %325 = vmatpush1.bf16.msra.mxu0 %v315
    %326 = vmatprep.subr.bf16.mxu0 0
    %327 = vmatpush1.bf16.msra.mxu0 %v314
    %328 = vmatprep.subr.bf16.mxu0 0
    %329 = vmatpush1.bf16.msra.mxu0 %v313
    %330 = vmatprep.subr.bf16.mxu0 0
    %331 = vmatpush1.bf16.msra.mxu0 %v312
    %332 = vmatprep.subr.bf16.mxu0 0
    %333 = vmatpush1.bf16.msra.mxu0 %v311
    %334 = vmatprep.subr.bf16.mxu0 0
    %335 = vmatpush1.bf16.msra.mxu0 %v310
    %336 = vmatprep.subr.bf16.mxu0 0
    %337 = vmatpush1.bf16.msra.mxu0 %v309
    %338 = vmatprep.subr.bf16.mxu0 0
    %339 = vmatpush1.bf16.msra.mxu0 %v308
    %340 = vmatprep.subr.bf16.mxu0 0
    %341 = vmatpush2.bf16.msra.mxu0 0
    %342 = vmatprep.subr.bf16.mxu0 0
    %343 = vmatpush2.bf16.msra.mxu0 0
    %344 = vmatprep.subr.bf16.mxu0 0
    %345 = vmatpush2.bf16.msra.mxu0 0
    %346 = vmatprep.subr.bf16.mxu0 0
    %347 = vmatpush2.bf16.msra.mxu0 0
    %348 = vmatprep.subr.bf16.mxu0 0
    %349 = vmatpush2.bf16.msra.mxu0 0
    %350 = vmatprep.subr.bf16.mxu0 0
    %351 = vmatpush2.bf16.msra.mxu0 0
    %352 = vmatprep.subr.bf16.mxu0 0
    %353 = vmatpush2.bf16.msra.mxu0 0
    %354 = vmatprep.subr.bf16.mxu0 0
    %355 = vmatpush2.bf16.msra.mxu0 0
    %356 = vmatprep.mubr.bf16.mxu0 0
    %357 = vmatmul.mubr.bf16.gmra.mxu0 %v249
    %v358 = vpop.f32.mrf.mxu0
    %v359 = vadd.f32 %v274, %v358
    %v360 = vpop.f32.mrf.mxu0
    %v361 = vpop.f32.mrf.mxu0
    %v362 = vadd.f32 %v274, %v361
    %v363 = vpop.f32.mrf.mxu0
    %364 = vmatprep.mubr.bf16.mxu0 0
    %365 = vmatmul.mubr.bf16.gmra.mxu0 %v250
    %v366 = vpop.f32.mrf.mxu0
    %v367 = vadd.f32 %v274, %v366
    %v368 = vpop.f32.mrf.mxu0
    %v369 = vpop.f32.mrf.mxu0
    %v370 = vadd.f32 %v274, %v369
    %v371 = vpop.f32.mrf.mxu0
    %372 = vmatprep.mubr.bf16.mxu0 0
    %373 = vmatmul.mubr.bf16.gmra.mxu0 %v251
    %v374 = vpop.f32.mrf.mxu0
    %v375 = vadd.f32 %v274, %v374
    %v376 = vpop.f32.mrf.mxu0
    %v377 = vpop.f32.mrf.mxu0
    %v378 = vadd.f32 %v274, %v377
    %v379 = vpop.f32.mrf.mxu0
    %380 = vmatprep.mubr.bf16.mxu0 0
    %381 = vmatmul.mubr.bf16.gmra.mxu0 %v252
    %v382 = vpop.f32.mrf.mxu0
    %v383 = vadd.f32 %v274, %v382
    %v384 = vpop.f32.mrf.mxu0
    %v385 = vpop.f32.mrf.mxu0
    %v386 = vadd.f32 %v274, %v385
    %v387 = vpop.f32.mrf.mxu0
    %388 = vdwg.mxu0
    %v389 = vpack.c.bf16 %v362, %v359
    %v390 = vpack.c.bf16 %v370, %v367
    %v391 = vpack.c.bf16 %v378, %v375
    %v392 = vpack.c.bf16 %v386, %v383
    %v393 = vld [vmem:[%s5] sm:$0xf]
    %v394 = vld [vmem:[%s5 + $0x4] sm:$0xf]
    %v395 = vld [vmem:[%s5 + $0x8] sm:$0xf]
    %v396 = vld [vmem:[%s5 + $0xc] sm:$0xf]
    %v397 = vld [vmem:[%s5 + $0x10] sm:$0xf]
    %v398 = vld [vmem:[%s5 + $0x14] sm:$0xf]
    %v399 = vld [vmem:[%s5 + $0x18] sm:$0xf]
    %v400 = vld [vmem:[%s5 + $0x1c] sm:$0xf]
    %v401 = vld [vmem:[%s5 + $0x20] sm:$0xf]
    %v402 = vld [vmem:[%s5 + $0x24] sm:$0xf]
    %v403 = vld [vmem:[%s5 + $0x28] sm:$0xf]
    %v404 = vld [vmem:[%s5 + $0x2c] sm:$0xf]
    %v405 = vld [vmem:[%s5 + $0x30] sm:$0xf]
    %v406 = vld [vmem:[%s5 + $0x34] sm:$0xf]
    %v407 = vld [vmem:[%s5 + $0x38] sm:$0xf]
    %v408 = vld [vmem:[%s5 + $0x3c] sm:$0xf]
    %v409 = vld [vmem:[%s6] sm:$0x1]
    %v411 = vlaneseq
    %v412 = vshrl.u32 %v411, 7
    %v413 = vsub.s32 0, %v412
    %v414 = vrot.slane %v409, %v413
    %v432 = vunpack.c.l.b16 %v393
    %v433 = vunpack.c.l.b16 %v394
    %v434 = vunpack.c.l.b16 %v395
    %v435 = vunpack.c.l.b16 %v396
    %v436 = vunpack.c.l.b16 %v397
    %v437 = vunpack.c.l.b16 %v398
    %v438 = vunpack.c.l.b16 %v399
    %v439 = vunpack.c.l.b16 %v400
    %v440 = vunpack.c.l.b16 %v401
    %v441 = vunpack.c.l.b16 %v402
    %v442 = vunpack.c.l.b16 %v403
    %v443 = vunpack.c.l.b16 %v404
    %v444 = vunpack.c.l.b16 %v405
    %v445 = vunpack.c.l.b16 %v406
    %v446 = vunpack.c.l.b16 %v407
    %v447 = vunpack.c.l.b16 %v408
    %v448 = vpack.c.b16 %v433, %v432
    %v449 = vpack.c.b16 %v435, %v434
    %v450 = vpack.c.b16 %v437, %v436
    %v451 = vpack.c.b16 %v439, %v438
    %v452 = vpack.c.b16 %v441, %v440
    %v453 = vpack.c.b16 %v443, %v442
    %v454 = vpack.c.b16 %v445, %v444
    %v455 = vpack.c.b16 %v447, %v446
    %464 = vmatprep.subr.bf16.mxu0 0
    %465 = vmatpush1.bf16.msra.mxu0 %v455
    %466 = vmatprep.subr.bf16.mxu0 0
    %467 = vmatpush1.bf16.msra.mxu0 %v454
    %468 = vmatprep.subr.bf16.mxu0 0
    %469 = vmatpush1.bf16.msra.mxu0 %v453
    %470 = vmatprep.subr.bf16.mxu0 0
    %471 = vmatpush1.bf16.msra.mxu0 %v452
    %472 = vmatprep.subr.bf16.mxu0 0
    %473 = vmatpush1.bf16.msra.mxu0 %v451
    %474 = vmatprep.subr.bf16.mxu0 0
    %475 = vmatpush1.bf16.msra.mxu0 %v450
    %476 = vmatprep.subr.bf16.mxu0 0
    %477 = vmatpush1.bf16.msra.mxu0 %v449
    %478 = vmatprep.subr.bf16.mxu0 0
    %479 = vmatpush1.bf16.msra.mxu0 %v448
    %480 = vmatprep.subr.bf16.mxu0 0
    %481 = vmatpush2.bf16.msra.mxu0 0
    %482 = vmatprep.subr.bf16.mxu0 0
    %483 = vmatpush2.bf16.msra.mxu0 0
    %484 = vmatprep.subr.bf16.mxu0 0
    %485 = vmatpush2.bf16.msra.mxu0 0
    %486 = vmatprep.subr.bf16.mxu0 0
    %487 = vmatpush2.bf16.msra.mxu0 0
    %488 = vmatprep.subr.bf16.mxu0 0
    %489 = vmatpush2.bf16.msra.mxu0 0
    %490 = vmatprep.subr.bf16.mxu0 0
    %491 = vmatpush2.bf16.msra.mxu0 0
    %492 = vmatprep.subr.bf16.mxu0 0
    %493 = vmatpush2.bf16.msra.mxu0 0
    %494 = vmatprep.subr.bf16.mxu0 0
    %495 = vmatpush2.bf16.msra.mxu0 0
    %496 = vmatprep.mubr.bf16.mxu0 0
    %497 = vmatmul.mubr.bf16.gmra.mxu0 %v389
    %v498 = vpop.f32.mrf.mxu0
    %v499 = vadd.f32 %v414, %v498
    %v500 = vpop.f32.mrf.mxu0
    %v501 = vpop.f32.mrf.mxu0
    %v502 = vadd.f32 %v414, %v501
    %v503 = vpop.f32.mrf.mxu0
    %504 = vmatprep.mubr.bf16.mxu0 0
    %505 = vmatmul.mubr.bf16.gmra.mxu0 %v390
    %v506 = vpop.f32.mrf.mxu0
    %v507 = vadd.f32 %v414, %v506
    %v508 = vpop.f32.mrf.mxu0
    %v509 = vpop.f32.mrf.mxu0
    %v510 = vadd.f32 %v414, %v509
    %v511 = vpop.f32.mrf.mxu0
    %512 = vmatprep.mubr.bf16.mxu0 0
    %513 = vmatmul.mubr.bf16.gmra.mxu0 %v391
    %v514 = vpop.f32.mrf.mxu0
    %v515 = vadd.f32 %v414, %v514
    %v516 = vpop.f32.mrf.mxu0
    %v517 = vpop.f32.mrf.mxu0
    %v518 = vadd.f32 %v414, %v517
    %v519 = vpop.f32.mrf.mxu0
    %520 = vmatprep.mubr.bf16.mxu0 0
    %521 = vmatmul.mubr.bf16.gmra.mxu0 %v392
    %v522 = vpop.f32.mrf.mxu0
    %v523 = vadd.f32 %v414, %v522
    %v524 = vpop.f32.mrf.mxu0
    %v525 = vpop.f32.mrf.mxu0
    %v526 = vadd.f32 %v414, %v525
    %v527 = vpop.f32.mrf.mxu0
    %528 = vdwg.mxu0
    %v529 = vmax.f32 %v499, 0.0
    %v530 = vmax.f32 %v502, 0.0
    %v531 = vmax.f32 %v507, 0.0
    %v532 = vmax.f32 %v510, 0.0
    %v533 = vmax.f32 %v515, 0.0
    %v534 = vmax.f32 %v518, 0.0
    %v535 = vmax.f32 %v523, 0.0
    %v536 = vmax.f32 %v526, 0.0
    %v537 = vpack.c.bf16 %v530, %v529
    %v538 = vpack.c.bf16 %v532, %v531
    %v539 = vpack.c.bf16 %v534, %v533
    %v540 = vpack.c.bf16 %v536, %v535
    %v541 = vld [vmem:[%s7] sm:$0xf]
    %v542 = vld [vmem:[%s7 + $0x4] sm:$0xf]
    %v543 = vld [vmem:[%s7 + $0x8] sm:$0xf]
    %v544 = vld [vmem:[%s7 + $0xc] sm:$0xf]
    %v545 = vld [vmem:[%s7 + $0x10] sm:$0xf]
    %v546 = vld [vmem:[%s7 + $0x14] sm:$0xf]
    %v547 = vld [vmem:[%s7 + $0x18] sm:$0xf]
    %v548 = vld [vmem:[%s7 + $0x1c] sm:$0xf]
    %v549 = vld [vmem:[%s8] sm:$0x1]
    %v551 = vlaneseq
    %v552 = vshrl.u32 %v551, 7
    %v553 = vsub.s32 0, %v552
    %v554 = vrot.slane %v549, %v553
    %v564 = vunpack.c.l.b16 %v541
    %v565 = vunpack.c.l.b16 %v542
    %v566 = vunpack.c.l.b16 %v543
    %v567 = vunpack.c.l.b16 %v544
    %v568 = vunpack.c.l.b16 %v545
    %v569 = vunpack.c.l.b16 %v546
    %v570 = vunpack.c.l.b16 %v547
    %v571 = vunpack.c.l.b16 %v548
    %v572 = vpack.c.b16 %v565, %v564
    %v573 = vpack.c.b16 %v567, %v566
    %v574 = vpack.c.b16 %v569, %v568
    %v575 = vpack.c.b16 %v571, %v570
    %vm580 = vcmask 523264
    %v582 = vsel %vm580, %v537, 0
    %v585 = vsel %vm580, %v538, 0
    %v588 = vsel %vm580, %v539, 0
    %v591 = vsel %vm580, %v540, 0
    %593 = vmatprep.subr.bf16.mxu0 0
    %594 = vmatpush1.bf16.msra.mxu0 0
    %595 = vmatprep.subr.bf16.mxu0 0
    %596 = vmatpush1.bf16.msra.mxu0 0
    %597 = vmatprep.subr.bf16.mxu0 0
    %598 = vmatpush1.bf16.msra.mxu0 0
    %599 = vmatprep.subr.bf16.mxu0 0
    %600 = vmatpush1.bf16.msra.mxu0 0
    %601 = vmatprep.subr.bf16.mxu0 0
    %602 = vmatpush1.bf16.msra.mxu0 %v575
    %603 = vmatprep.subr.bf16.mxu0 0
    %604 = vmatpush1.bf16.msra.mxu0 %v574
    %605 = vmatprep.subr.bf16.mxu0 0
    %606 = vmatpush1.bf16.msra.mxu0 %v573
    %607 = vmatprep.subr.bf16.mxu0 0
    %608 = vmatpush1.bf16.msra.mxu0 %v572
    %609 = vmatprep.subr.bf16.mxu0 0
    %610 = vmatpush2.bf16.msra.mxu0 0
    %611 = vmatprep.subr.bf16.mxu0 0
    %612 = vmatpush2.bf16.msra.mxu0 0
    %613 = vmatprep.subr.bf16.mxu0 0
    %614 = vmatpush2.bf16.msra.mxu0 0
    %615 = vmatprep.subr.bf16.mxu0 0
    %616 = vmatpush2.bf16.msra.mxu0 0
    %617 = vmatprep.subr.bf16.mxu0 0
    %618 = vmatpush2.bf16.msra.mxu0 0
    %619 = vmatprep.subr.bf16.mxu0 0
    %620 = vmatpush2.bf16.msra.mxu0 0
    %621 = vmatprep.subr.bf16.mxu0 0
    %622 = vmatpush2.bf16.msra.mxu0 0
    %623 = vmatprep.subr.bf16.mxu0 0
    %624 = vmatpush2.bf16.msra.mxu0 0
    %625 = vmatprep.mubr.bf16.mxu0 0
    %626 = vmatmul.mubr.bf16.gmra.mxu0 %v582
    %v627 = vpop.f32.mrf.mxu0
    %v628 = vadd.f32 %v554, %v627
    %v629 = vpop.f32.mrf.mxu0
    %v630 = vpop.f32.mrf.mxu0
    %v631 = vadd.f32 %v554, %v630
    %v632 = vpop.f32.mrf.mxu0
    %633 = vmatprep.mubr.bf16.mxu0 0
    %634 = vmatmul.mubr.bf16.gmra.mxu0 %v585
    %v635 = vpop.f32.mrf.mxu0
    %v636 = vadd.f32 %v554, %v635
    %v637 = vpop.f32.mrf.mxu0
    %v638 = vpop.f32.mrf.mxu0
    %v639 = vadd.f32 %v554, %v638
    %v640 = vpop.f32.mrf.mxu0
    %641 = vmatprep.mubr.bf16.mxu0 0
    %642 = vmatmul.mubr.bf16.gmra.mxu0 %v588
    %v643 = vpop.f32.mrf.mxu0
    %v644 = vadd.f32 %v554, %v643
    %v645 = vpop.f32.mrf.mxu0
    %v646 = vpop.f32.mrf.mxu0
    %v647 = vadd.f32 %v554, %v646
    %v648 = vpop.f32.mrf.mxu0
    %649 = vmatprep.mubr.bf16.mxu0 0
    %650 = vmatmul.mubr.bf16.gmra.mxu0 %v591
    %v651 = vpop.f32.mrf.mxu0
    %v652 = vadd.f32 %v554, %v651
    %v653 = vpop.f32.mrf.mxu0
    %v654 = vpop.f32.mrf.mxu0
    %v655 = vadd.f32 %v554, %v654
    %v656 = vpop.f32.mrf.mxu0
    %657 = vdwg.mxu0
    %v658 = vmax.f32 %v628, 0.0
    %v659 = vmax.f32 %v631, 0.0
    %v660 = vmax.f32 %v636, 0.0
    %v661 = vmax.f32 %v639, 0.0
    %v662 = vmax.f32 %v644, 0.0
    %v663 = vmax.f32 %v647, 0.0
    %v664 = vmax.f32 %v652, 0.0
    %v665 = vmax.f32 %v655, 0.0
    %v666 = vpack.c.bf16 %v659, %v658
    %v667 = vpack.c.bf16 %v661, %v660
    %v668 = vpack.c.bf16 %v663, %v662
    %v669 = vpack.c.bf16 %v665, %v664
    %v670 = vld [vmem:[%s9] sm:$0xf]
    %v671 = vld [vmem:[%s9 + $0x4] sm:$0xf]
    %v672 = vld [vmem:[%s9 + $0x8] sm:$0xf]
    %v673 = vld [vmem:[%s9 + $0xc] sm:$0xf]
    %v678 = vunpack.c.l.b16 %v670
    %v679 = vunpack.c.l.b16 %v671
    %v680 = vunpack.c.l.b16 %v672
    %v681 = vunpack.c.l.b16 %v673
    %v682 = vpack.c.b16 %v679, %v678
    %v683 = vpack.c.b16 %v681, %v680
    %vm686 = vcmask 261120
    %v688 = vsel %vm686, %v666, 0
    %v691 = vsel %vm686, %v667, 0
    %v694 = vsel %vm686, %v668, 0
    %v697 = vsel %vm686, %v669, 0
    %699 = vmatprep.subr.bf16.mxu0 0
    %700 = vmatpush1.bf16.msra.mxu0 0
    %701 = vmatprep.subr.bf16.mxu0 0
    %702 = vmatpush1.bf16.msra.mxu0 0
    %703 = vmatprep.subr.bf16.mxu0 0
    %704 = vmatpush1.bf16.msra.mxu0 0
    %705 = vmatprep.subr.bf16.mxu0 0
    %706 = vmatpush1.bf16.msra.mxu0 0
    %707 = vmatprep.subr.bf16.mxu0 0
    %708 = vmatpush1.bf16.msra.mxu0 0
    %709 = vmatprep.subr.bf16.mxu0 0
    %710 = vmatpush1.bf16.msra.mxu0 0
    %711 = vmatprep.subr.bf16.mxu0 0
    %712 = vmatpush1.bf16.msra.mxu0 %v683
    %713 = vmatprep.subr.bf16.mxu0 0
    %714 = vmatpush1.bf16.msra.mxu0 %v682
    %715 = vmatprep.subr.bf16.mxu0 0
    %716 = vmatpush2.bf16.msra.mxu0 0
    %717 = vmatprep.subr.bf16.mxu0 0
    %718 = vmatpush2.bf16.msra.mxu0 0
    %719 = vmatprep.subr.bf16.mxu0 0
    %720 = vmatpush2.bf16.msra.mxu0 0
    %721 = vmatprep.subr.bf16.mxu0 0
    %722 = vmatpush2.bf16.msra.mxu0 0
    %723 = vmatprep.subr.bf16.mxu0 0
    %724 = vmatpush2.bf16.msra.mxu0 0
    %725 = vmatprep.subr.bf16.mxu0 0
    %726 = vmatpush2.bf16.msra.mxu0 0
    %727 = vmatprep.subr.bf16.mxu0 0
    %728 = vmatpush2.bf16.msra.mxu0 0
    %729 = vmatprep.subr.bf16.mxu0 0
    %730 = vmatpush2.bf16.msra.mxu0 0
    %731 = vmatprep.mubr.bf16.mxu0 0
    %732 = vmatmul.mubr.bf16.gmra.mxu0 %v688
    %v733 = vpop.f32.mrf.mxu0
    %v734 = vadd.f32 0.0, %v733
    %v735 = vpop.f32.mrf.mxu0
    %v736 = vpop.f32.mrf.mxu0
    %v737 = vadd.f32 0.0, %v736
    %v738 = vpop.f32.mrf.mxu0
    %739 = vmatprep.mubr.bf16.mxu0 0
    %740 = vmatmul.mubr.bf16.gmra.mxu0 %v691
    %v741 = vpop.f32.mrf.mxu0
    %v742 = vadd.f32 0.0, %v741
    %v743 = vpop.f32.mrf.mxu0
    %v744 = vpop.f32.mrf.mxu0
    %v745 = vadd.f32 0.0, %v744
    %v746 = vpop.f32.mrf.mxu0
    %747 = vmatprep.mubr.bf16.mxu0 0
    %748 = vmatmul.mubr.bf16.gmra.mxu0 %v694
    %v749 = vpop.f32.mrf.mxu0
    %v750 = vadd.f32 0.0, %v749
    %v751 = vpop.f32.mrf.mxu0
    %v752 = vpop.f32.mrf.mxu0
    %v753 = vadd.f32 0.0, %v752
    %v754 = vpop.f32.mrf.mxu0
    %755 = vmatprep.mubr.bf16.mxu0 0
    %756 = vmatmul.mubr.bf16.gmra.mxu0 %v697
    %v757 = vpop.f32.mrf.mxu0
    %v758 = vadd.f32 0.0, %v757
    %v759 = vpop.f32.mrf.mxu0
    %v760 = vpop.f32.mrf.mxu0
    %v761 = vadd.f32 0.0, %v760
    %v762 = vpop.f32.mrf.mxu0
    %763 = vdwg.mxu0
    %v764 = vld [vmem:[#allocation6] sm:$0xff]
    %v765 = vld [vmem:[#allocation6 + $0x8] sm:$0xff]
    %v766 = vld [vmem:[#allocation6 + $0x10] sm:$0xff]
    %v767 = vld [vmem:[#allocation6 + $0x18] sm:$0xff]
    %v768 = vld [vmem:[#allocation6 + $0x20] sm:$0xff]
    %v769 = vld [vmem:[#allocation6 + $0x28] sm:$0xff]
    %v770 = vld [vmem:[#allocation6 + $0x30] sm:$0xff]
    %v771 = vld [vmem:[#allocation6 + $0x38] sm:$0xff]
    %v772 = vmul.f32 %v734, %v764
    %v773 = vmul.f32 %v737, %v765
    %v774 = vmul.f32 %v742, %v766
    %v775 = vmul.f32 %v745, %v767
    %v776 = vmul.f32 %v750, %v768
    %v777 = vmul.f32 %v753, %v769
    %v778 = vmul.f32 %v758, %v770
    %v779 = vmul.f32 %v761, %v771
    %v780 = vadd.f32 %v772, %v773
    %v781 = vadd.f32 %v780, %v774
    %v782 = vadd.f32 %v781, %v775
    %v783 = vadd.f32 %v782, %v776
    %v784 = vadd.f32 %v783, %v777
    %v785 = vadd.f32 %v784, %v778
    %v786 = vadd.f32 %v785, %v779
    %v787 = vrot.slane %v786, 4
    %v788 = vadd.f32 %v786, %v787
    %v789 = vrot.slane %v788, 2
    %v790 = vadd.f32 %v788, %v789
    %v791 = vrot.slane %v790, 1
    %v792 = vadd.f32 %v790, %v791
    %v793 = vld [vmem:[#allocation2] sm:$0x1]
    %795 = vset.pattern.permute.xlu0 0
    %796 = vperm.xlu0 %795, %v793
    %v797 = vpop.permute.xlu0 %796
    %v799 = vlaneseq
    %v800 = vshrl.u32 %v799, 7
    %v801 = vsub.s32 0, %v800
    %v802 = vrot.slane %v797, %v801
    %v803 = vadd.f32 %v792, %v802
    %804 = vst [vmem:[#allocation8] sm:$0x1] %v803
    // Predicated region
    $region58: #{tpu_custom_call.1} parent=1 // pred_check
      _
    $region59: #{tpu_custom_call.1} parent=1 // pred_check_branch
      %806 = sbr.rel (0) target = $region61
    $region60: #{tpu_custom_call.1} parent=1 // pred_region
      %s808 = ssub.s32 16, 16
      %809 = vsyncadd [#allocation5], %s808
      %s811 = sshll.u32 [#allocation8], 4
      %s812 = int_to_ptr.vmem [resolvable:$true] %s811
      %814 = dma.vmem_to_hbm [thread:$0]  %s812, 16, %s12, [#allocation5]
    $region61: #{tpu_custom_call.1} parent=1 // pred_fallthru
      _
    // Predicated region
    $region62: #{tpu_custom_call.1} parent=1 // pred_check
      _
    $region63: #{tpu_custom_call.1} parent=1 // pred_check_branch
      %816 = sbr.rel (0) target = $region65
    $region64: #{tpu_custom_call.1} parent=1 // pred_region
      %817 = dma.done [#allocation5], 16
    $region65: #{tpu_custom_call.1} parent=1 // pred_fallthru
      _
    %818 = vsyncpa [#allocation4], 1
    %819 = vsyncpa [#allocation7], 1
    %820 = vsyncpa [#allocation5], 1

</llo_original>
